<compile_context>
chip_gen: v5e
topology: v5e:2x2
jax: 0.10.0
libtpu: 0.0.40
codegen_flags: <defaults>
</compile_context>

<pallas_src>
import jax
import jax.numpy as jnp
from jax.experimental import pallas as pl
from jax.experimental.pallas import tpu as pltpu


_LANE = 128
_SUBLANE = 8
# Per-buffer block budget (bytes). Gridded path double-buffers in+out, so the
# effective VMEM footprint is ~4x this; 4 MiB keeps us well under v5e's 16 MiB
# default scoped VMEM and v7x's 32 MiB default / 64 MiB physical.
_BLOCK_BYTES_BUDGET = 4 * 1024 * 1024
_MAX_BLOCK_ROWS = 2048  # (2048, 128) f32 = 1 MiB per block, >=85% HBM roofline


def _identity_copy_kernel(x_ref, o_ref):
    # Whole-block copy: the only well-defined dataflow of the empty forward.
    o_ref[...] = x_ref[...]


def _pallas_identity(x: jax.Array) -> jax.Array:
    """Identity copy of `x` through a Pallas TPU kernel (lane-dense layout)."""
    shape = x.shape
    dtype = x.dtype
    total = x.size
    itemsize = jnp.dtype(dtype).itemsize

    # Pad the flat length up to a multiple of 8*128 so the 2D slab is
    # (rows % 8 == 0, 128): full-width unmasked stores, (8,128)-tileable.
    chunk = _SUBLANE * _LANE
    padded = pl.cdiv(total, chunk) * chunk
    flat = x.reshape(-1)
    if padded != total:
        flat = jnp.pad(flat, (0, padded - total))
    rows = padded // _LANE
    x2d = flat.reshape(rows, _LANE)

    block_bytes = rows * _LANE * itemsize
    if block_bytes <= _BLOCK_BYTES_BUDGET:
        # Small array: single grid-less full-array block (block == full array).
        out2d = pl.pallas_call(
            _identity_copy_kernel,
            out_shape=jax.ShapeDtypeStruct((rows, _LANE), dtype),
            in_specs=[pl.BlockSpec((rows, _LANE), lambda: (0, 0))],
            out_specs=pl.BlockSpec((rows, _LANE), lambda: (0, 0)),
            # Real elision requires caller-side donation; see jit wrapper below.
            input_output_aliases={0: 0},
        )(x2d)
    else:
        # Large array: 1-D row grid, lane-dense blocks, sharded across
        # TensorCores on v7x via 'parallel' semantics.
        block_rows = min(rows, _MAX_BLOCK_ROWS)
        grid_rows = pl.cdiv(rows, block_rows) * block_rows
        if grid_rows != rows:
            x2d = jnp.pad(x2d, ((0, grid_rows - rows), (0, 0)))
            rows = grid_rows
        out2d = pl.pallas_call(
            _identity_copy_kernel,
            out_shape=jax.ShapeDtypeStruct((rows, _LANE), dtype),
            grid=(rows // block_rows,),
            in_specs=[pl.BlockSpec((block_rows, _LANE), lambda i: (i, 0))],
            out_specs=pl.BlockSpec((block_rows, _LANE), lambda i: (i, 0)),
            input_output_aliases={0: 0},
            compiler_params=pltpu.CompilerParams(
                dimension_semantics=("parallel",)
            ),
        )(x2d)

    return out2d.reshape(-1)[:total].reshape(shape)


# Explicit donation so input_output_aliases={0: 0} actually reuses the input
# HBM buffer instead of degrading to a defensive copy. The donated argument
# must not be reused by the caller afterwards.
_pallas_identity_donated = jax.jit(_pallas_identity, donate_argnums=0)


def my_model_forward(x: jax.Array, *, use_pallas_copy: bool = False) -> jax.Array:
    """Pallas equivalent of MyModelClass().forward(x).

    The reference forward is a no-op, so the default (and fastest) behaviour on
    every TPU generation is to return `x` directly — no kernel launch at all.
    Set `use_pallas_copy=True` to route through the Pallas identity-copy kernel
    (the input buffer is donated; do not reuse it after the call).
    """
    if not use_pallas_copy:
        return x
    return _pallas_identity_donated(x)


if __name__ == "__main__":
    key = jax.random.PRNGKey(0)
    # Small NCHW input consistent with an (unspecified) image-like forward.
    x = jax.random.normal(key, (2, 4, 16, 16), dtype=jnp.float32)

    # Default path: pure pass-through, zero kernel overhead.
    out_fast = my_model_forward(x)
    assert out_fast is x

    # Exercise the Pallas identity kernel once (donate a fresh copy so the
    # input/output alias is genuinely elidable and `x` stays usable).
    x_donor = jnp.copy(x)
    out_kernel = my_model_forward(x_donor, use_pallas_copy=True)
    jax.block_until_ready(out_kernel)

    assert out_kernel.shape == x.shape and out_kernel.dtype == x.dtype
    assert bool(jnp.all(out_kernel == x))

    print("KERNEL_OK")
</pallas_src>

<mosaic_0001>
module attributes {stable_mosaic.version = 11 : i64} {
  func.func @_identity_copy_kernel(%arg0: memref<16x128xf32, #tpu.memory_space<vmem>>, %arg1: memref<16x128xf32, #tpu.memory_space<vmem>>) attributes {dimension_semantics = [], scalar_prefetch = 0 : i64, scratch_operands = 0 : i64, tpu.core_type = #tpu.core_type<tc>} {
    %c0 = arith.constant 0 : index
    %c0_0 = arith.constant 0 : index
    %0 = vector.load %arg0[%c0, %c0_0] : memref<16x128xf32, #tpu.memory_space<vmem>>, vector<16x128xf32>
    %c0_1 = arith.constant 0 : index
    %c0_2 = arith.constant 0 : index
    %1 = vector.load %arg1[%c0_1, %c0_2] : memref<16x128xf32, #tpu.memory_space<vmem>>, vector<16x128xf32>
    tpu.vector_store %arg1[%c0_1, %c0_2], %0 {strides = array<i32>} : memref<16x128xf32, #tpu.memory_space<vmem>>, vector<16x128xf32>,
    return
  }
}

</mosaic_0001>

<llo_original>
// kernel: _pallas_identity.1
$region0: #{_pallas_identity.1}
  #allocation0 [shape = 'u32[]', space=smem, size = 0x4, offset = 0x4, fixed_abs, tag = 'smem constant byte address 0x4 - core index']
  #allocation1 [shape = 'u32[72,128]{1,0:T(1,128)}', space=vmem, size = 0x9000, scoped, tag = 'internal scratch']
  %s0 = inlined_call_operand.vmem [shape: f32[16,128], index: 0, kind: input, shape index: {}, may-alias: {0,1}]
  %s1 = inlined_call_operand.vmem [shape: f32[16,128], index: 1, kind: output, shape index: {}, may-alias: {0,1}]
  %s2 = sld [smem:[#allocation0]]
  $region14: #{_pallas_identity.1} parent=0
    _
  %s4 = ssub.s32 1, %s2
  %s5 = scalar_select 0, %s4, %s2
  // Predicated region
  $region2: #{_pallas_identity.1} parent=0 // pred_check
    _
  $region3: #{_pallas_identity.1} parent=0 // pred_check_branch
    %7 = sbr.rel (0) target = $region5
  $region4: #{_pallas_identity.1} parent=0 // pred_region
    _
  $region5: #{_pallas_identity.1} parent=0 // pred_fallthru
    _
  %v8 = vld [vmem:[%s0] sm:$0xff]
  %v9 = vld [vmem:[%s0 + $0x8] sm:$0xff]
  %10 = vst [vmem:[%s1] sm:$0xff] %v8
  %11 = vst [vmem:[%s1 + $0x8] sm:$0xff] %v9
  // Predicated region
  $region6: #{_pallas_identity.1} parent=0 // pred_check
    _
  $region7: #{_pallas_identity.1} parent=0 // pred_check_branch
    %13 = sbr.rel (0) target = $region9
  $region8: #{_pallas_identity.1} parent=0 // pred_region
    _
  $region9: #{_pallas_identity.1} parent=0 // pred_fallthru
    _
  // Predicated region
  $region10: #{_pallas_identity.1} parent=0 // pred_check
    _
  $region11: #{_pallas_identity.1} parent=0 // pred_check_branch
    %15 = sbr.rel (0) target = $region13
  $region12: #{_pallas_identity.1} parent=0 // pred_region
    _
  $region13: #{_pallas_identity.1} parent=0 // pred_fallthru
    _

</llo_original>
